<compile_context>
chip_gen: v5e
topology: v5e:2x2
jax: 0.10.0
libtpu: 0.0.40
codegen_flags: <defaults>
</compile_context>

<pallas_src>
import jax
import jax.numpy as jnp
from jax.experimental import pallas as pl
from jax.experimental.pallas import tpu as pltpu


def _glob_sigmoid_kernel(half_alpha_ref, smh_ref, x_ref, o_ref):
    # half_alpha_ref: (1,) f32 scalar in SMEM (= 0.5 * alpha)
    # smh_ref:        (tr, 1) or (1, tl) f32, = 0.5 * alpha * beta * mean (broadcast)
    # x_ref:          (tr, tl) input tile
    ha = half_alpha_ref[0]
    x = x_ref[...].astype(jnp.float32)           # compute in f32 (bf16-safe)
    t = ha * x - smh_ref[...]                    # 0.5 * (alpha*x - alpha*beta*mean)
    # sigmoid(z) == 0.5 * (1 + tanh(z/2)): one EUP transcendental per element.
    o_ref[...] = (0.5 + 0.5 * jnp.tanh(t)).astype(o_ref.dtype)


def _round_up(v, m):
    return (v + m - 1) // m * m


def _select_tiles(rows, lanes, itemsize):
    """Pick (tr, tl) for a (rows, lanes) slab: ~6 MiB f32 blocks, >=2 grid steps."""
    LANE_CAP = 8192                              # multiple of 128
    TARGET_ELEMS = 1536 * 1024                   # ~6 MiB at 4 B/elem
    tl = lanes if lanes <= LANE_CAP else LANE_CAP
    max_tr = max(8, (TARGET_ELEMS // max(tl, 1)) // 8 * 8)
    tr = rows if rows <= max_tr else max_tr
    # Guarantee >= 2 grid steps for non-trivial problems (v7x megacore split).
    if rows * lanes * itemsize > 2 * 1024 * 1024:
        if pl.cdiv(rows, tr) * pl.cdiv(lanes, tl) < 2:
            if rows >= 16:
                tr = min(tr, max(8, _round_up(pl.cdiv(rows, 2), 8)))
            elif lanes >= 256:
                tl = min(tl, max(128, _round_up(pl.cdiv(lanes, 2), 128)))
    return tr, tl


def glob_sigmoid(x, mean, alpha, beta):
    """x: (B, C, L), mean: (C,). Returns 1/(1+exp(alpha*(beta*mean - x)))."""
    B, C, L = x.shape
    assert mean.shape == (C,), "num_classes must equal channel dim of x"
    itemsize = jnp.dtype(x.dtype).itemsize

    # Fold constants once in the wrapper (tiny (C,) op).
    smh = (0.5 * jnp.float32(alpha) * jnp.float32(beta)) * mean.astype(jnp.float32)
    half_alpha = jnp.asarray([0.5 * alpha], dtype=jnp.float32)

    lane_dense = (L % 128 == 0) and (L >= 128)
    if lane_dense:
        # Layout A: rows = B*C, lanes = L; scaled mean as a per-row column,
        # resident across lane blocks.
        R2, L2 = B * C, L
        x2 = x.reshape(R2, L2)
        sm2 = jnp.tile(smh, B).reshape(R2, 1)            # row r -> mean[r % C]
    else:
        # Layout B: fold C (and L) into the lane axis -> lane-dense output even
        # for small / ragged L; scaled mean as a (1, C*L) lane vector.
        R2, L2 = B, C * L
        x2 = x.reshape(R2, L2)
        sm2 = jnp.repeat(smh, L).reshape(1, L2)          # lane c*L+l -> mean[c]

    tr, tl = _select_tiles(R2, L2, itemsize)
    grid = (pl.cdiv(R2, tr), pl.cdiv(L2, tl))

    if lane_dense:
        sm_spec = pl.BlockSpec((tr, 1), lambda i, j: (i, 0))
    else:
        sm_spec = pl.BlockSpec((1, tl), lambda i, j: (0, j))

    out2 = pl.pallas_call(
        _glob_sigmoid_kernel,
        out_shape=jax.ShapeDtypeStruct((R2, L2), x.dtype),
        grid_spec=pltpu.PrefetchScalarGridSpec(
            num_scalar_prefetch=0,
            grid=grid,
            in_specs=[
                # 0.5*alpha: scalar parameter, lives in SMEM.
                pl.BlockSpec(memory_space=pltpu.MemorySpace.SMEM),
                # scaled-mean broadcast operand.
                sm_spec,
                # input tile.
                pl.BlockSpec((tr, tl), lambda i, j: (i, j)),
            ],
            out_specs=pl.BlockSpec((tr, tl), lambda i, j: (i, j)),
        ),
        compiler_params=pltpu.CompilerParams(
            dimension_semantics=("parallel", "parallel"),
            # ~4x block (in+out double-buffered) + slack; <= 40 MiB so it fits
            # v7x's 64 MiB physical VMEM and overrides v5e's 16 MiB default.
            vmem_limit_bytes=40 * 1024 * 1024,
        ),
    )(half_alpha, sm2, x2)

    return out2.reshape(B, C, L)


def glob_sigmoid_ref(x, mean, alpha, beta):
    # Pure-JAX reference matching the PyTorch forward exactly.
    m = mean[None, :, None]
    return 1.0 / (1.0 + jnp.exp(alpha * (beta * m - x)))


if __name__ == "__main__":
    key = jax.random.PRNGKey(0)
    k_x, k_m, k_x2, k_m2, k_x3, k_m3 = jax.random.split(key, 6)
    alpha, beta = 2.0, 0.5

    # 1) Small shape consistent with the module (exercises layout B, grid=(1,1)).
    B, num_classes, L = 2, 4, 16
    x = jax.random.normal(k_x, (B, num_classes, L), dtype=jnp.float32)
    mean = jax.random.normal(k_m, (num_classes,), dtype=jnp.float32)
    out = glob_sigmoid(x, mean, alpha, beta)
    jax.block_until_ready(out)
    ref = glob_sigmoid_ref(x, mean, alpha, beta)
    assert out.shape == x.shape
    assert jnp.allclose(out, ref, atol=1e-5, rtol=1e-5)

    # 2) Lane-dense layout A with forced >=2-step parallel grid (megacore path).
    B2, C2, L2 = 2, 256, 2048
    x_a = jax.random.normal(k_x2, (B2, C2, L2), dtype=jnp.float32)
    mean_a = jax.random.normal(k_m2, (C2,), dtype=jnp.float32)
    out_a = glob_sigmoid(x_a, mean_a, alpha, beta)
    jax.block_until_ready(out_a)
    assert jnp.allclose(out_a, glob_sigmoid_ref(x_a, mean_a, alpha, beta),
                        atol=1e-5, rtol=1e-5)

    # 3) Ragged L (not multiple of 128): folded lane layout + tiled lane axis.
    B3, C3, L3 = 2, 8, 3000
    x_b = jax.random.normal(k_x3, (B3, C3, L3), dtype=jnp.float32)
    mean_b = jax.random.normal(k_m3, (C3,), dtype=jnp.float32)
    out_b = glob_sigmoid(x_b, mean_b, alpha, beta)
    jax.block_until_ready(out_b)
    assert jnp.allclose(out_b, glob_sigmoid_ref(x_b, mean_b, alpha, beta),
                        atol=1e-5, rtol=1e-5)

    print("KERNEL_OK")
</pallas_src>

<mosaic_0001>
module attributes {stable_mosaic.version = 11 : i64} {
  func.func @_glob_sigmoid_kernel(%arg0: i32, %arg1: i32, %arg2: memref<1xf32, #tpu.memory_space<smem>>, %arg3: memref<1x64xf32, #tpu.memory_space<vmem>>, %arg4: memref<2x64xf32, #tpu.memory_space<vmem>>, %arg5: memref<2x64xf32, #tpu.memory_space<vmem>>) attributes {dimension_semantics = [#tpu.dimension_semantics<parallel>, #tpu.dimension_semantics<parallel>], iteration_bounds = array<i64: 1, 1>, scalar_prefetch = 0 : i64, scratch_operands = 0 : i64, tpu.core_type = #tpu.core_type<tc>, window_params = [{transform_indices = @transform_0, window_bounds = array<i64: 1>}, {transform_indices = @transform_1, window_bounds = array<i64: 1, 64>}, {transform_indices = @transform_2, window_bounds = array<i64: 2, 64>}, {transform_indices = @transform_3, window_bounds = array<i64: 2, 64>}]} {
    %c0 = arith.constant 0 : index
    %0 = memref.load %arg2[%c0] : memref<1xf32, #tpu.memory_space<smem>>
    %c0_0 = arith.constant 0 : index
    %c0_1 = arith.constant 0 : index
    %1 = vector.load %arg4[%c0_0, %c0_1] : memref<2x64xf32, #tpu.memory_space<vmem>>, vector<2x64xf32>
    %2 = vector.broadcast %0 : f32 to vector<2x64xf32>
    %3 = arith.mulf %2, %1 : vector<2x64xf32>
    %c0_2 = arith.constant 0 : index
    %c0_3 = arith.constant 0 : index
    %4 = vector.load %arg3[%c0_2, %c0_3] : memref<1x64xf32, #tpu.memory_space<vmem>>, vector<1x64xf32>
    %5 = vector.broadcast %4 : vector<1x64xf32> to vector<2x64xf32>
    %6 = arith.subf %3, %5 : vector<2x64xf32>
    %7 = math.tanh %6 : vector<2x64xf32>
    %cst = arith.constant 5.000000e-01 : f32
    %8 = vector.broadcast %cst : f32 to vector<2x64xf32>
    %9 = arith.mulf %8, %7 : vector<2x64xf32>
    %cst_4 = arith.constant 5.000000e-01 : f32
    %10 = vector.broadcast %cst_4 : f32 to vector<2x64xf32>
    %11 = arith.addf %10, %9 : vector<2x64xf32>
    %c0_5 = arith.constant 0 : index
    %c0_6 = arith.constant 0 : index
    %12 = vector.load %arg5[%c0_5, %c0_6] : memref<2x64xf32, #tpu.memory_space<vmem>>, vector<2x64xf32>
    tpu.vector_store %arg5[%c0_5, %c0_6], %11 {strides = array<i32>} : memref<2x64xf32, #tpu.memory_space<vmem>>, vector<2x64xf32>,
    return
  }
  func.func @transform_0(%arg0: i32, %arg1: i32) -> i32 {
    %c0_i32 = arith.constant 0 : i32
    %c0_i32_0 = arith.constant 0 : i32
    return %c0_i32 : i32
  }
  func.func @transform_1(%arg0: i32, %arg1: i32) -> (i32, i32) {
    %c0_i32 = arith.constant 0 : i32
    %c0_i32_0 = arith.constant 0 : i32
    return %c0_i32, %arg1 : i32, i32
  }
  func.func @transform_2(%arg0: i32, %arg1: i32) -> (i32, i32) {
    %c0_i32 = arith.constant 0 : i32
    return %arg0, %arg1 : i32, i32
  }
  func.func @transform_3(%arg0: i32, %arg1: i32) -> (i32, i32) {
    %c0_i32 = arith.constant 0 : i32
    return %arg0, %arg1 : i32, i32
  }
}

</mosaic_0001>

<llo_original>
// kernel: tpu_custom_call.1
$region0: #{tpu_custom_call.1}
  #allocation0 [shape = 'u32[]', space=smem, size = 0x4, offset = 0x4, fixed_abs, tag = 'smem constant byte address 0x4 - core index']
  #allocation1 [shape = 'u32[72,128]{1,0:T(1,128)}', space=vmem, size = 0x9000, scoped, tag = 'internal scratch']
  #allocation2 [shape = 'f32[1]{0:T(128)S(6)}', space=smem, size = 0x200, scoped, tag = 'scoped memory for tpu_custom_call.1']
  %s0 = inlined_call_operand.<no memory space> [shape: f32[1], index: 0, kind: input, shape index: {}]
  %s1 = inlined_call_operand.hbm [shape: f32[1,64], index: 1, kind: input, shape index: {}]
  %s2 = inlined_call_operand.vmem [shape: f32[2,64], index: 2, kind: input, shape index: {}]
  %s3 = inlined_call_operand.hbm [shape: f32[2,64], index: 3, kind: output, shape index: {}]
  %s4 = sld [smem:[#allocation0]]
  $region26: #{tpu_custom_call.1} parent=0
    _
  %s6 = ssub.s32 1, %s4
  %s7 = scalar_select 0, %s6, %s4
  %8 = sst [smem:[#allocation2]] %s0
  $region1: #{tpu_custom_call.1} parent=0
    #allocation3 [shape = 'u8[512]{0}', space=vmem, size = 0x400, scoped, tag = 'input window, operand 1, single buffered']
    #allocation4 [shape = 's32[1]{0}', space=sflag, size = 0x4, scoped, tag = 'scoped memory for tpu_custom_call.1']
    #allocation5 [shape = 's32[1]{0}', space=sflag, size = 0x4, scoped, tag = 'scoped memory for tpu_custom_call.1']
    #allocation6 [shape = 'u8[1024]{0}', space=vmem, size = 0x400, scoped, tag = 'output window, operand 0, single buffered']
    %9 = vsyncpa [#allocation4], 0
    %10 = vsyncpa [#allocation5], 0
    // Predicated region
    $region2: #{tpu_custom_call.1} parent=1 // pred_check
      _
    $region3: #{tpu_custom_call.1} parent=1 // pred_check_branch
      %12 = sbr.rel (0) target = $region5
    $region4: #{tpu_custom_call.1} parent=1 // pred_region
      _
    $region5: #{tpu_custom_call.1} parent=1 // pred_fallthru
      _
    // Predicated region
    $region6: #{tpu_custom_call.1} parent=1 // pred_check
      _
    $region7: #{tpu_custom_call.1} parent=1 // pred_check_branch
      %14 = sbr.rel (0) target = $region9
    $region8: #{tpu_custom_call.1} parent=1 // pred_region
      %16 = vsyncadd [#allocation4], 0
      %s18 = sshll.u32 %s1, 4
      %s19 = int_to_ptr.hbm [resolvable:$true] %s18
      %s20 = sshll.u32 [#allocation3], 4
      %s21 = int_to_ptr.vmem [resolvable:$true] %s20
      %23 = dma.hbm_to_vmem [thread:$0]  %s19, 16, %s21, [#allocation4]
    $region9: #{tpu_custom_call.1} parent=1 // pred_fallthru
      _
    // Predicated region
    $region10: #{tpu_custom_call.1} parent=1 // pred_check
      _
    $region11: #{tpu_custom_call.1} parent=1 // pred_check_branch
      %25 = sbr.rel (0) target = $region13
    $region12: #{tpu_custom_call.1} parent=1 // pred_region
      _
    $region13: #{tpu_custom_call.1} parent=1 // pred_fallthru
      _
    // Predicated region
    $region14: #{tpu_custom_call.1} parent=1 // pred_check
      _
    $region15: #{tpu_custom_call.1} parent=1 // pred_check_branch
      %27 = sbr.rel (0) target = $region17
    $region16: #{tpu_custom_call.1} parent=1 // pred_region
      %29 = dma.done [#allocation4], 16
    $region17: #{tpu_custom_call.1} parent=1 // pred_fallthru
      _
    %s30 = sld [smem:[#allocation2]]
    %v31 = vld [vmem:[%s2] sm:$0x3]
    %v32 = vstv %s30
    %v33 = vmul.f32 %v32, %v31
    %v34 = vld [vmem:[#allocation3] sm:$0x1]
    %v36 = vperm.slane %v34, 0
    %v38 = vsub.f32 %v33, %v36
    %v39 = vtanh.pop %v38
    %v40 = vmul.f32 %v39, 0.5
    %v41 = vadd.f32 %v40, 0.5
    %vm42 = vcmask 517120
    %43 = vst.msk [vmem:[#allocation6] sm:$0x3] %vm42, %v41
    // Predicated region
    $region18: #{tpu_custom_call.1} parent=1 // pred_check
      _
    $region19: #{tpu_custom_call.1} parent=1 // pred_check_branch
      %45 = sbr.rel (0) target = $region21
    $region20: #{tpu_custom_call.1} parent=1 // pred_region
      %47 = vsyncadd [#allocation5], 0
      %s49 = sshll.u32 [#allocation6], 4
      %s50 = int_to_ptr.vmem [resolvable:$true] %s49
      %s51 = sshll.u32 %s3, 4
      %s52 = int_to_ptr.hbm [resolvable:$true] %s51
      %54 = dma.vmem_to_hbm [thread:$0]  %s50, 32, %s52, [#allocation5]
    $region21: #{tpu_custom_call.1} parent=1 // pred_fallthru
      _
    // Predicated region
    $region22: #{tpu_custom_call.1} parent=1 // pred_check
      _
    $region23: #{tpu_custom_call.1} parent=1 // pred_check_branch
      %56 = sbr.rel (0) target = $region25
    $region24: #{tpu_custom_call.1} parent=1 // pred_region
      %58 = dma.done [#allocation5], 32
    $region25: #{tpu_custom_call.1} parent=1 // pred_fallthru
      _
    %59 = vsyncpa [#allocation4], 1
    %60 = vsyncpa [#allocation5], 1

</llo_original>
